<compile_context>
chip_gen: v5e
topology: v5e:2x2
jax: 0.10.0
libtpu: 0.0.40
codegen_flags: <defaults>
</compile_context>

<pallas_src>
import jax
import jax.numpy as jnp
from jax.experimental import pallas as pl
from jax.experimental.pallas import tpu as pltpu


# ----------------------------- Pallas kernel --------------------------------
def clip_kernel(
    patches_ref, txt_ref, pool_img_ref, pool_txt_ref,
    iw1_ref, ib1_ref, ig_ref, ibt_ref,
    tw1_ref, tb1_ref, tg_ref, tbt_ref,
    w2_ref, b2_ref,
    o_ref,
):
    """Fused CLIP forward for one batch block.

    patches_ref : [Bb*P, Dp_pad] bf16  flattened (zero-padded) image patches
    txt_ref     : [Bb*T, Ht]     bf16  token + positional embeddings
    pool_*_ref  : [Bb, Bb*N]     bf16  block-diagonal mean-pool matrices
    w2_ref      : [Hi+Ht, E]     bf16  stacked img/txt projection (fused)
    b2_ref      : [1, E]         f32   img_b2 + txt_b2
    o_ref       : [Bb, E]        f32   clip_features = img_feat + txt_feat
    """

    def encode(x2, pool, w1, b1, gamma, beta):
        # token-wise linear on the MXU (bf16 operands, f32 accumulation)
        h = jnp.dot(x2, w1, preferred_element_type=jnp.float32) + b1
        # LayerNorm over the lane-dense (128-wide) feature dim, single pass:
        # var = E[x^2] - mu^2 (all statistics in f32)
        mu = jnp.mean(h, axis=-1, keepdims=True)
        ms = jnp.mean(h * h, axis=-1, keepdims=True)
        var = ms - mu * mu
        h = (h - mu) * jax.lax.rsqrt(var + 1e-5) * gamma + beta
        # mean pool over tokens/patches as a matmul -> runs on the MXU,
        # avoids any in-kernel reshape / XLU sublane reduce
        return jnp.dot(pool, h.astype(jnp.bfloat16),
                       preferred_element_type=jnp.float32)

    p_img = encode(patches_ref[...], pool_img_ref[...],
                   iw1_ref[...], ib1_ref[...], ig_ref[...], ibt_ref[...])
    p_txt = encode(txt_ref[...], pool_txt_ref[...],
                   tw1_ref[...], tb1_ref[...], tg_ref[...], tbt_ref[...])

    # Fused projection + feature add: one lane-dense [Bb, 2H] x [2H, E] matmul
    pooled = jnp.concatenate([p_img, p_txt], axis=-1).astype(jnp.bfloat16)
    feat = jnp.dot(pooled, w2_ref[...], preferred_element_type=jnp.float32)
    o_ref[...] = (feat + b2_ref[...]).astype(o_ref.dtype)


# ------------------------------ wrapper --------------------------------------
def clip_forward(image_nchw, text_tokens, params, *, block_b=None):
    """image_nchw: [B, C, H, W] float32 (NCHW), text_tokens: [B, T] int32."""
    B, C, H, W = image_nchw.shape
    p = params["patch"]
    gh, gw = H // p, W // p
    P = gh * gw
    Dp = C * p * p
    Dp_pad = ((Dp + 127) // 128) * 128           # lane-dense K for first matmul

    if block_b is None:
        # NOTE: for realistic batch sizes pick block_b as a multiple of 8 so
        # the "parallel" batch grid shards across v7x's two TensorCores and
        # keeps per-block activations within v7x's 64 MiB VMEM.
        block_b = B
    assert B % block_b == 0

    # --- glue: im2col patch extraction; (C, ph, pw) flattening matches the
    # nn.Conv2d weight layout of a ViT patch embedding ---
    patches = (
        image_nchw.reshape(B, C, gh, p, gw, p)
        .transpose(0, 2, 4, 1, 3, 5)             # [B, gh, gw, C, ph, pw]
        .reshape(B * P, Dp)
    )
    patches = jnp.pad(patches, ((0, 0), (0, Dp_pad - Dp))).astype(jnp.bfloat16)

    # --- glue: token + positional embedding lookup (gather stays in XLA) ---
    # TODO(synk): the embedding gather could become an in-kernel DMA gather
    # via scalar prefetch if the vocab/seq grows.
    T = text_tokens.shape[1]
    txt = params["tok_emb"][text_tokens] + params["pos_emb"][None, :T, :]
    Ht = txt.shape[-1]
    txt = txt.reshape(B * T, Ht).astype(jnp.bfloat16)

    E = params["img_w2"].shape[1]

    # --- lane-dense bf16 weights for the MXU (f32 biases / LN params) ---
    img_w1 = jnp.pad(params["img_w1"],
                     ((0, Dp_pad - Dp), (0, 0))).astype(jnp.bfloat16)
    txt_w1 = params["txt_w1"].astype(jnp.bfloat16)
    # fuse the two projections + the final feature add into a single matmul
    w2 = jnp.concatenate([params["img_w2"], params["txt_w2"]],
                         axis=0).astype(jnp.bfloat16)
    b2 = (params["img_b2"] + params["txt_b2"]).astype(jnp.float32)

    # --- block-diagonal mean-pool matrices (built once, outside the kernel) ---
    def pool_matrix(n_tok):
        eye = jnp.eye(block_b, dtype=jnp.float32)
        return (jnp.repeat(eye, n_tok, axis=1) / n_tok).astype(jnp.bfloat16)

    pool_img = pool_matrix(P)                    # [block_b, block_b*P]
    pool_txt = pool_matrix(T)                    # [block_b, block_b*T]

    def resident(a):                             # full-array, constant index_map
        nd = a.ndim
        return pl.BlockSpec(a.shape, lambda i, _nd=nd: (0,) * _nd)

    residents = (
        pool_img, pool_txt,
        img_w1, params["img_b1"], params["img_ln_g"], params["img_ln_b"],
        txt_w1, params["txt_b1"], params["txt_ln_g"], params["txt_ln_b"],
        w2, b2,
    )

    grid = (B // block_b,)
    return pl.pallas_call(
        clip_kernel,
        out_shape=jax.ShapeDtypeStruct((B, E), jnp.float32),
        grid=grid,
        in_specs=[
            pl.BlockSpec((block_b * P, Dp_pad), lambda i: (i, 0)),
            pl.BlockSpec((block_b * T, Ht), lambda i: (i, 0)),
            *[resident(a) for a in residents],
        ],
        out_specs=pl.BlockSpec((block_b, E), lambda i: (i, 0)),
        compiler_params=pltpu.CompilerParams(
            dimension_semantics=("parallel",),    # batch axis -> megacore
            vmem_limit_bytes=32 * 1024 * 1024,    # explicit budget, v7x-safe
        ),
    )(patches, txt, *residents)


# --------------------------- deterministic params ----------------------------
def init_params(key, *, C=3, patch=8, img_width=128, txt_width=128,
                vocab=32, max_seq=8, embed_dim=128):
    Dp = C * patch * patch
    ks = jax.random.split(key, 6)
    s = 0.02
    return {
        "patch": patch,
        # image encoder (lane-dense hidden width)
        "img_w1": s * jax.random.normal(ks[0], (Dp, img_width), jnp.float32),
        "img_b1": jnp.zeros((1, img_width), jnp.float32),
        "img_ln_g": jnp.ones((1, img_width), jnp.float32),
        "img_ln_b": jnp.zeros((1, img_width), jnp.float32),
        "img_w2": s * jax.random.normal(ks[1], (img_width, embed_dim), jnp.float32),
        "img_b2": jnp.zeros((1, embed_dim), jnp.float32),
        # text encoder (lane-dense hidden width)
        "tok_emb": s * jax.random.normal(ks[2], (vocab, txt_width), jnp.float32),
        "pos_emb": s * jax.random.normal(ks[3], (max_seq, txt_width), jnp.float32),
        "txt_w1": s * jax.random.normal(ks[4], (txt_width, txt_width), jnp.float32),
        "txt_b1": jnp.zeros((1, txt_width), jnp.float32),
        "txt_ln_g": jnp.ones((1, txt_width), jnp.float32),
        "txt_ln_b": jnp.zeros((1, txt_width), jnp.float32),
        "txt_w2": s * jax.random.normal(ks[5], (txt_width, embed_dim), jnp.float32),
        "txt_b2": jnp.zeros((1, embed_dim), jnp.float32),
    }


if __name__ == "__main__":
    key = jax.random.PRNGKey(0)
    k_img, k_txt, k_par = jax.random.split(key, 3)

    B, C, H, W = 2, 3, 32, 32          # image: NCHW
    T, VOCAB = 8, 32                   # text tokens

    image = jax.random.normal(k_img, (B, C, H, W), jnp.float32)
    text = jax.random.randint(k_txt, (B, T), 0, VOCAB, jnp.int32)
    params = init_params(k_par, C=C, patch=8, vocab=VOCAB, max_seq=T)

    feats = clip_forward(image, text, params)
    jax.block_until_ready(feats)

    assert feats.shape == (B, 128) and feats.dtype == jnp.float32
    assert bool(jnp.all(jnp.isfinite(feats)))
    # TODO(synk): the original module calls an external pretrained clip.load();
    # weights here are synthetic deterministic initializations instead.
    print("KERNEL_OK")
</pallas_src>

<mosaic_0001>
module attributes {stable_mosaic.version = 11 : i64} {
  func.func @clip_kernel(%arg0: i32, %arg1: memref<32x256xbf16, #tpu.memory_space<vmem>>, %arg2: memref<16x128xbf16, #tpu.memory_space<vmem>>, %arg3: memref<2x32xbf16, #tpu.memory_space<vmem>>, %arg4: memref<2x16xbf16, #tpu.memory_space<vmem>>, %arg5: memref<256x128xbf16, #tpu.memory_space<vmem>>, %arg6: memref<1x128xf32, #tpu.memory_space<vmem>>, %arg7: memref<1x128xf32, #tpu.memory_space<vmem>>, %arg8: memref<1x128xf32, #tpu.memory_space<vmem>>, %arg9: memref<128x128xbf16, #tpu.memory_space<vmem>>, %arg10: memref<1x128xf32, #tpu.memory_space<vmem>>, %arg11: memref<1x128xf32, #tpu.memory_space<vmem>>, %arg12: memref<1x128xf32, #tpu.memory_space<vmem>>, %arg13: memref<256x128xbf16, #tpu.memory_space<vmem>>, %arg14: memref<1x128xf32, #tpu.memory_space<vmem>>, %arg15: memref<2x128xf32, #tpu.memory_space<vmem>>) attributes {dimension_semantics = [#tpu.dimension_semantics<parallel>], iteration_bounds = array<i64: 1>, scalar_prefetch = 0 : i64, scratch_operands = 0 : i64, tpu.core_type = #tpu.core_type<tc>, window_params = [{transform_indices = @transform_0, window_bounds = array<i64: 32, 256>}, {transform_indices = @transform_1, window_bounds = array<i64: 16, 128>}, {pipeline_mode = #tpu.pipeline_mode<synchronous>, transform_indices = @transform_2, window_bounds = array<i64: 2, 32>}, {pipeline_mode = #tpu.pipeline_mode<synchronous>, transform_indices = @transform_3, window_bounds = array<i64: 2, 16>}, {pipeline_mode = #tpu.pipeline_mode<synchronous>, transform_indices = @transform_4, window_bounds = array<i64: 256, 128>}, {pipeline_mode = #tpu.pipeline_mode<synchronous>, transform_indices = @transform_5, window_bounds = array<i64: 1, 128>}, {pipeline_mode = #tpu.pipeline_mode<synchronous>, transform_indices = @transform_6, window_bounds = array<i64: 1, 128>}, {pipeline_mode = #tpu.pipeline_mode<synchronous>, transform_indices = @transform_7, window_bounds = array<i64: 1, 128>}, {pipeline_mode = #tpu.pipeline_mode<synchronous>, transform_indices = @transform_8, window_bounds = array<i64: 128, 128>}, {pipeline_mode = #tpu.pipeline_mode<synchronous>, transform_indices = @transform_9, window_bounds = array<i64: 1, 128>}, {pipeline_mode = #tpu.pipeline_mode<synchronous>, transform_indices = @transform_10, window_bounds = array<i64: 1, 128>}, {pipeline_mode = #tpu.pipeline_mode<synchronous>, transform_indices = @transform_11, window_bounds = array<i64: 1, 128>}, {pipeline_mode = #tpu.pipeline_mode<synchronous>, transform_indices = @transform_12, window_bounds = array<i64: 256, 128>}, {pipeline_mode = #tpu.pipeline_mode<synchronous>, transform_indices = @transform_13, window_bounds = array<i64: 1, 128>}, {transform_indices = @transform_14, window_bounds = array<i64: 2, 128>}]} {
    %c0 = arith.constant 0 : index
    %c0_0 = arith.constant 0 : index
    %0 = vector.load %arg1[%c0, %c0_0] : memref<32x256xbf16, #tpu.memory_space<vmem>>, vector<32x256xbf16>
    %c0_1 = arith.constant 0 : index
    %c0_2 = arith.constant 0 : index
    %1 = vector.load %arg3[%c0_1, %c0_2] : memref<2x32xbf16, #tpu.memory_space<vmem>>, vector<2x32xbf16>
    %c0_3 = arith.constant 0 : index
    %c0_4 = arith.constant 0 : index
    %2 = vector.load %arg5[%c0_3, %c0_4] : memref<256x128xbf16, #tpu.memory_space<vmem>>, vector<256x128xbf16>
    %c0_5 = arith.constant 0 : index
    %c0_6 = arith.constant 0 : index
    %3 = vector.load %arg6[%c0_5, %c0_6] : memref<1x128xf32, #tpu.memory_space<vmem>>, vector<1x128xf32>
    %c0_7 = arith.constant 0 : index
    %c0_8 = arith.constant 0 : index
    %4 = vector.load %arg7[%c0_7, %c0_8] : memref<1x128xf32, #tpu.memory_space<vmem>>, vector<1x128xf32>
    %c0_9 = arith.constant 0 : index
    %c0_10 = arith.constant 0 : index
    %5 = vector.load %arg8[%c0_9, %c0_10] : memref<1x128xf32, #tpu.memory_space<vmem>>, vector<1x128xf32>
    %cst = arith.constant dense<0.000000e+00> : vector<32x128xf32>
    %6 = tpu.matmul %0, %2, %cst {dimension_numbers = #tpu.dot_dimension_numbers<[1], [0], [0], [1], [0, 0, 1, 1], [], []>} : vector<32x256xbf16>, vector<256x128xbf16>, vector<32x128xf32> -> vector<32x128xf32>
    %7 = vector.broadcast %3 : vector<1x128xf32> to vector<32x128xf32>
    %8 = arith.addf %6, %7 : vector<32x128xf32>
    %cst_11 = arith.constant dense<0.000000e+00> : vector<32xf32>
    %9 = vector.multi_reduction <add>, %8, %cst_11 [1] : vector<32x128xf32> to vector<32xf32>
    %10 = vector.shape_cast %9 : vector<32xf32> to vector<32x1xf32>
    %cst_12 = arith.constant 1.280000e+02 : f32
    %11 = vector.broadcast %cst_12 : f32 to vector<32x1xf32>
    %12 = arith.divf %10, %11 : vector<32x1xf32>
    %13 = arith.mulf %8, %8 : vector<32x128xf32>
    %cst_13 = arith.constant dense<0.000000e+00> : vector<32xf32>
    %14 = vector.multi_reduction <add>, %13, %cst_13 [1] : vector<32x128xf32> to vector<32xf32>
    %15 = vector.shape_cast %14 : vector<32xf32> to vector<32x1xf32>
    %cst_14 = arith.constant 1.280000e+02 : f32
    %16 = vector.broadcast %cst_14 : f32 to vector<32x1xf32>
    %17 = arith.divf %15, %16 : vector<32x1xf32>
    %18 = arith.mulf %12, %12 : vector<32x1xf32>
    %19 = arith.subf %17, %18 : vector<32x1xf32>
    %20 = vector.broadcast %12 : vector<32x1xf32> to vector<32x128xf32>
    %21 = arith.subf %8, %20 : vector<32x128xf32>
    %cst_15 = arith.constant 9.99999974E-6 : f32
    %22 = vector.broadcast %cst_15 : f32 to vector<32x1xf32>
    %23 = arith.addf %19, %22 : vector<32x1xf32>
    %24 = math.rsqrt %23 : vector<32x1xf32>
    %25 = vector.broadcast %24 : vector<32x1xf32> to vector<32x128xf32>
    %26 = arith.mulf %21, %25 : vector<32x128xf32>
    %27 = vector.broadcast %4 : vector<1x128xf32> to vector<32x128xf32>
    %28 = arith.mulf %26, %27 : vector<32x128xf32>
    %29 = vector.broadcast %5 : vector<1x128xf32> to vector<32x128xf32>
    %30 = arith.addf %28, %29 : vector<32x128xf32>
    %31 = arith.truncf %30 : vector<32x128xf32> to vector<32x128xbf16>
    %cst_16 = arith.constant dense<0.000000e+00> : vector<2x128xf32>
    %32 = tpu.matmul %1, %31, %cst_16 {dimension_numbers = #tpu.dot_dimension_numbers<[1], [0], [0], [1], [0, 0, 1, 1], [], []>} : vector<2x32xbf16>, vector<32x128xbf16>, vector<2x128xf32> -> vector<2x128xf32>
    %c0_17 = arith.constant 0 : index
    %c0_18 = arith.constant 0 : index
    %33 = vector.load %arg2[%c0_17, %c0_18] : memref<16x128xbf16, #tpu.memory_space<vmem>>, vector<16x128xbf16>
    %c0_19 = arith.constant 0 : index
    %c0_20 = arith.constant 0 : index
    %34 = vector.load %arg4[%c0_19, %c0_20] : memref<2x16xbf16, #tpu.memory_space<vmem>>, vector<2x16xbf16>
    %c0_21 = arith.constant 0 : index
    %c0_22 = arith.constant 0 : index
    %35 = vector.load %arg9[%c0_21, %c0_22] : memref<128x128xbf16, #tpu.memory_space<vmem>>, vector<128x128xbf16>
    %c0_23 = arith.constant 0 : index
    %c0_24 = arith.constant 0 : index
    %36 = vector.load %arg10[%c0_23, %c0_24] : memref<1x128xf32, #tpu.memory_space<vmem>>, vector<1x128xf32>
    %c0_25 = arith.constant 0 : index
    %c0_26 = arith.constant 0 : index
    %37 = vector.load %arg11[%c0_25, %c0_26] : memref<1x128xf32, #tpu.memory_space<vmem>>, vector<1x128xf32>
    %c0_27 = arith.constant 0 : index
    %c0_28 = arith.constant 0 : index
    %38 = vector.load %arg12[%c0_27, %c0_28] : memref<1x128xf32, #tpu.memory_space<vmem>>, vector<1x128xf32>
    %cst_29 = arith.constant dense<0.000000e+00> : vector<16x128xf32>
    %39 = tpu.matmul %33, %35, %cst_29 {dimension_numbers = #tpu.dot_dimension_numbers<[1], [0], [0], [1], [0, 0, 1, 1], [], []>} : vector<16x128xbf16>, vector<128x128xbf16>, vector<16x128xf32> -> vector<16x128xf32>
    %40 = vector.broadcast %36 : vector<1x128xf32> to vector<16x128xf32>
    %41 = arith.addf %39, %40 : vector<16x128xf32>
    %cst_30 = arith.constant dense<0.000000e+00> : vector<16xf32>
    %42 = vector.multi_reduction <add>, %41, %cst_30 [1] : vector<16x128xf32> to vector<16xf32>
    %43 = vector.shape_cast %42 : vector<16xf32> to vector<16x1xf32>
    %cst_31 = arith.constant 1.280000e+02 : f32
    %44 = vector.broadcast %cst_31 : f32 to vector<16x1xf32>
    %45 = arith.divf %43, %44 : vector<16x1xf32>
    %46 = arith.mulf %41, %41 : vector<16x128xf32>
    %cst_32 = arith.constant dense<0.000000e+00> : vector<16xf32>
    %47 = vector.multi_reduction <add>, %46, %cst_32 [1] : vector<16x128xf32> to vector<16xf32>
    %48 = vector.shape_cast %47 : vector<16xf32> to vector<16x1xf32>
    %cst_33 = arith.constant 1.280000e+02 : f32
    %49 = vector.broadcast %cst_33 : f32 to vector<16x1xf32>
    %50 = arith.divf %48, %49 : vector<16x1xf32>
    %51 = arith.mulf %45, %45 : vector<16x1xf32>
    %52 = arith.subf %50, %51 : vector<16x1xf32>
    %53 = vector.broadcast %45 : vector<16x1xf32> to vector<16x128xf32>
    %54 = arith.subf %41, %53 : vector<16x128xf32>
    %cst_34 = arith.constant 9.99999974E-6 : f32
    %55 = vector.broadcast %cst_34 : f32 to vector<16x1xf32>
    %56 = arith.addf %52, %55 : vector<16x1xf32>
    %57 = math.rsqrt %56 : vector<16x1xf32>
    %58 = vector.broadcast %57 : vector<16x1xf32> to vector<16x128xf32>
    %59 = arith.mulf %54, %58 : vector<16x128xf32>
    %60 = vector.broadcast %37 : vector<1x128xf32> to vector<16x128xf32>
    %61 = arith.mulf %59, %60 : vector<16x128xf32>
    %62 = vector.broadcast %38 : vector<1x128xf32> to vector<16x128xf32>
    %63 = arith.addf %61, %62 : vector<16x128xf32>
    %64 = arith.truncf %63 : vector<16x128xf32> to vector<16x128xbf16>
    %cst_35 = arith.constant dense<0.000000e+00> : vector<2x128xf32>
    %65 = tpu.matmul %34, %64, %cst_35 {dimension_numbers = #tpu.dot_dimension_numbers<[1], [0], [0], [1], [0, 0, 1, 1], [], []>} : vector<2x16xbf16>, vector<16x128xbf16>, vector<2x128xf32> -> vector<2x128xf32>
    %66 = tpu.concatenate %32, %65 in 1 : vector<2x128xf32>, vector<2x128xf32> -> vector<2x256xf32>
    %67 = arith.truncf %66 : vector<2x256xf32> to vector<2x256xbf16>
    %c0_36 = arith.constant 0 : index
    %c0_37 = arith.constant 0 : index
    %68 = vector.load %arg13[%c0_36, %c0_37] : memref<256x128xbf16, #tpu.memory_space<vmem>>, vector<256x128xbf16>
    %cst_38 = arith.constant dense<0.000000e+00> : vector<2x128xf32>
    %69 = tpu.matmul %67, %68, %cst_38 {dimension_numbers = #tpu.dot_dimension_numbers<[1], [0], [0], [1], [0, 0, 1, 1], [], []>} : vector<2x256xbf16>, vector<256x128xbf16>, vector<2x128xf32> -> vector<2x128xf32>
    %c0_39 = arith.constant 0 : index
    %c0_40 = arith.constant 0 : index
    %70 = vector.load %arg14[%c0_39, %c0_40] : memref<1x128xf32, #tpu.memory_space<vmem>>, vector<1x128xf32>
    %71 = vector.broadcast %70 : vector<1x128xf32> to vector<2x128xf32>
    %72 = arith.addf %69, %71 : vector<2x128xf32>
    %c0_41 = arith.constant 0 : index
    %c0_42 = arith.constant 0 : index
    %73 = vector.load %arg15[%c0_41, %c0_42] : memref<2x128xf32, #tpu.memory_space<vmem>>, vector<2x128xf32>
    tpu.vector_store %arg15[%c0_41, %c0_42], %72 {strides = array<i32>} : memref<2x128xf32, #tpu.memory_space<vmem>>, vector<2x128xf32>,
    return
  }
  func.func @transform_0(%arg0: i32) -> (i32, i32) {
    %c0_i32 = arith.constant 0 : i32
    %c0_i32_0 = arith.constant 0 : i32
    return %arg0, %c0_i32 : i32, i32
  }
  func.func @transform_1(%arg0: i32) -> (i32, i32) {
    %c0_i32 = arith.constant 0 : i32
    %c0_i32_0 = arith.constant 0 : i32
    return %arg0, %c0_i32 : i32, i32
  }
  func.func @transform_2(%arg0: i32) -> (i32, i32) {
    %c0_i32 = arith.constant 0 : i32
    %c0_i32_0 = arith.constant 0 : i32
    %c0_i32_1 = arith.constant 0 : i32
    return %c0_i32, %c0_i32_0 : i32, i32
  }
  func.func @transform_3(%arg0: i32) -> (i32, i32) {
    %c0_i32 = arith.constant 0 : i32
    %c0_i32_0 = arith.constant 0 : i32
    %c0_i32_1 = arith.constant 0 : i32
    return %c0_i32, %c0_i32_0 : i32, i32
  }
  func.func @transform_4(%arg0: i32) -> (i32, i32) {
    %c0_i32 = arith.constant 0 : i32
    %c0_i32_0 = arith.constant 0 : i32
    %c0_i32_1 = arith.constant 0 : i32
    return %c0_i32, %c0_i32_0 : i32, i32
  }
  func.func @transform_5(%arg0: i32) -> (i32, i32) {
    %c0_i32 = arith.constant 0 : i32
    %c0_i32_0 = arith.constant 0 : i32
    %c0_i32_1 = arith.constant 0 : i32
    return %c0_i32, %c0_i32_0 : i32, i32
  }
  func.func @transform_6(%arg0: i32) -> (i32, i32) {
    %c0_i32 = arith.constant 0 : i32
    %c0_i32_0 = arith.constant 0 : i32
    %c0_i32_1 = arith.constant 0 : i32
    return %c0_i32, %c0_i32_0 : i32, i32
  }
  func.func @transform_7(%arg0: i32) -> (i32, i32) {
    %c0_i32 = arith.constant 0 : i32
    %c0_i32_0 = arith.constant 0 : i32
    %c0_i32_1 = arith.constant 0 : i32
    return %c0_i32, %c0_i32_0 : i32, i32
  }
  func.func @transform_8(%arg0: i32) -> (i32, i32) {
    %c0_i32 = arith.constant 0 : i32
    %c0_i32_0 = arith.constant 0 : i32
    %c0_i32_1 = arith.constant 0 : i32
    return %c0_i32, %c0_i32_0 : i32, i32
  }
  func.func @transform_9(%arg0: i32) -> (i32, i32) {
    %c0_i32 = arith.constant 0 : i32
    %c0_i32_0 = arith.constant 0 : i32
    %c0_i32_1 = arith.constant 0 : i32
    return %c0_i32, %c0_i32_0 : i32, i32
  }
  func.func @transform_10(%arg0: i32) -> (i32, i32) {
    %c0_i32 = arith.constant 0 : i32
    %c0_i32_0 = arith.constant 0 : i32
    %c0_i32_1 = arith.constant 0 : i32
    return %c0_i32, %c0_i32_0 : i32, i32
  }
  func.func @transform_11(%arg0: i32) -> (i32, i32) {
    %c0_i32 = arith.constant 0 : i32
    %c0_i32_0 = arith.constant 0 : i32
    %c0_i32_1 = arith.constant 0 : i32
    return %c0_i32, %c0_i32_0 : i32, i32
  }
  func.func @transform_12(%arg0: i32) -> (i32, i32) {
    %c0_i32 = arith.constant 0 : i32
    %c0_i32_0 = arith.constant 0 : i32
    %c0_i32_1 = arith.constant 0 : i32
    return %c0_i32, %c0_i32_0 : i32, i32
  }
  func.func @transform_13(%arg0: i32) -> (i32, i32) {
    %c0_i32 = arith.constant 0 : i32
    %c0_i32_0 = arith.constant 0 : i32
    %c0_i32_1 = arith.constant 0 : i32
    return %c0_i32, %c0_i32_0 : i32, i32
  }
  func.func @transform_14(%arg0: i32) -> (i32, i32) {
    %c0_i32 = arith.constant 0 : i32
    %c0_i32_0 = arith.constant 0 : i32
    return %arg0, %c0_i32 : i32, i32
  }
}

</mosaic_0001>

<llo_original>
// kernel: tpu_custom_call.1
$region0: #{tpu_custom_call.1}
  #allocation0 [shape = 'u32[]', space=smem, size = 0x4, offset = 0x4, fixed_abs, tag = 'smem constant byte address 0x4 - core index']
  #allocation1 [shape = 'u32[72,128]{1,0:T(1,128)}', space=vmem, size = 0x9000, scoped, tag = 'internal scratch']
  %s0 = inlined_call_operand.hbm [shape: bf16[32,256], index: 0, kind: input, shape index: {}]
  %s1 = inlined_call_operand.hbm [shape: bf16[16,128], index: 1, kind: input, shape index: {}]
  %s2 = inlined_call_operand.vmem [shape: bf16[2,32], index: 2, kind: input, shape index: {}]
  %s3 = inlined_call_operand.vmem [shape: bf16[2,16], index: 3, kind: input, shape index: {}]
  %s4 = inlined_call_operand.hbm [shape: bf16[256,128], index: 4, kind: input, shape index: {}]
  %s5 = inlined_call_operand.vmem [shape: f32[1,128], index: 5, kind: input, shape index: {}]
  %s6 = inlined_call_operand.vmem [shape: f32[1,128], index: 6, kind: input, shape index: {}]
  %s7 = inlined_call_operand.vmem [shape: f32[1,128], index: 7, kind: input, shape index: {}]
  %s8 = inlined_call_operand.hbm [shape: bf16[128,128], index: 8, kind: input, shape index: {}]
  %s9 = inlined_call_operand.vmem [shape: f32[1,128], index: 9, kind: input, shape index: {}]
  %s10 = inlined_call_operand.vmem [shape: f32[1,128], index: 10, kind: input, shape index: {}]
  %s11 = inlined_call_operand.vmem [shape: f32[1,128], index: 11, kind: input, shape index: {}]
  %s12 = inlined_call_operand.hbm [shape: bf16[256,128], index: 12, kind: input, shape index: {}]
  %s13 = inlined_call_operand.vmem [shape: f32[1,128], index: 13, kind: input, shape index: {}]
  %s14 = inlined_call_operand.hbm [shape: f32[2,128], index: 14, kind: output, shape index: {}]
  %s15 = sld [smem:[#allocation0]]
  $region86: #{tpu_custom_call.1} parent=0
    _
  %s17 = ssub.s32 1, %s15
  %s18 = scalar_select 0, %s17, %s15
  $region1: #{tpu_custom_call.1} parent=0
    #allocation2 [shape = 'u8[16384]{0}', space=vmem, size = 0x4000, scoped, tag = 'input window, operand 0, single buffered']
    #allocation3 [shape = 's32[1]{0}', space=sflag, size = 0x4, scoped, tag = 'scoped memory for tpu_custom_call.1']
    #allocation4 [shape = 's32[1]{0}', space=sflag, size = 0x4, scoped, tag = 'scoped memory for tpu_custom_call.1']
    #allocation5 [shape = 'u8[4096]{0}', space=vmem, size = 0x1000, scoped, tag = 'input window, operand 1, single buffered']
    #allocation6 [shape = 's32[1]{0}', space=sflag, size = 0x4, scoped, tag = 'scoped memory for tpu_custom_call.1']
    #allocation7 [shape = 'u8[65536]{0}', space=vmem, size = 0x10000, scoped, tag = 'input window, operand 4, single buffered']
    #allocation8 [shape = 'u8[32768]{0}', space=vmem, size = 0x8000, scoped, tag = 'input window, operand 8, single buffered']
    #allocation9 [shape = 's32[1]{0}', space=sflag, size = 0x4, scoped, tag = 'scoped memory for tpu_custom_call.1']
    #allocation10 [shape = 'u8[65536]{0}', space=vmem, size = 0x10000, scoped, tag = 'input window, operand 12, single buffered']
    #allocation11 [shape = 'u8[1024]{0}', space=vmem, size = 0x400, scoped, tag = 'output window, operand 0, single buffered']
    %19 = vsyncpa [#allocation3], 0
    %20 = vsyncpa [#allocation6], 0
    %21 = vsyncpa [#allocation9], 0
    %22 = vsyncpa [#allocation4], 0
    // Predicated region
    $region2: #{tpu_custom_call.1} parent=1 // pred_check
      _
    $region3: #{tpu_custom_call.1} parent=1 // pred_check_branch
      %24 = sbr.rel (0) target = $region5
    $region4: #{tpu_custom_call.1} parent=1 // pred_region
      %26 = vsyncadd [#allocation3], 0
      %s27 = sshll.u32 %s0, 4
      %s28 = int_to_ptr.hbm [resolvable:$true] %s27
      %s29 = sshll.u32 [#allocation2], 4
      %s30 = int_to_ptr.vmem [resolvable:$true] %s29
      %35 = dma.hbm_to_vmem [thread:$0]  %s28, 512, %s30, [#allocation3], 128, 128, 8
    $region5: #{tpu_custom_call.1} parent=1 // pred_fallthru
      _
    // Predicated region
    $region6: #{tpu_custom_call.1} parent=1 // pred_check
      _
    $region7: #{tpu_custom_call.1} parent=1 // pred_check_branch
      %37 = sbr.rel (0) target = $region9
    $region8: #{tpu_custom_call.1} parent=1 // pred_region
      %39 = vsyncadd [#allocation6], 0
      %s40 = sshll.u32 %s1, 4
      %s41 = int_to_ptr.hbm [resolvable:$true] %s40
      %s42 = sshll.u32 [#allocation5], 4
      %s43 = int_to_ptr.vmem [resolvable:$true] %s42
      %48 = dma.hbm_to_vmem [thread:$0]  %s41, 128, %s43, [#allocation6], 64, 64, 4
    $region9: #{tpu_custom_call.1} parent=1 // pred_fallthru
      _
    // Predicated region
    $region10: #{tpu_custom_call.1} parent=1 // pred_check
      _
    $region11: #{tpu_custom_call.1} parent=1 // pred_check_branch
      %50 = sbr.rel (0) target = $region13
    $region12: #{tpu_custom_call.1} parent=1 // pred_region
      _
    $region13: #{tpu_custom_call.1} parent=1 // pred_fallthru
      _
    // Predicated region
    $region14: #{tpu_custom_call.1} parent=1 // pred_check
      _
    $region15: #{tpu_custom_call.1} parent=1 // pred_check_branch
      %52 = sbr.rel (0) target = $region17
    $region16: #{tpu_custom_call.1} parent=1 // pred_region
      _
    $region17: #{tpu_custom_call.1} parent=1 // pred_fallthru
      _
    // Predicated region
    $region18: #{tpu_custom_call.1} parent=1 // pred_check
      _
    $region19: #{tpu_custom_call.1} parent=1 // pred_check_branch
      %54 = sbr.rel (0) target = $region21
    $region20: #{tpu_custom_call.1} parent=1 // pred_region
      %56 = vsyncadd [#allocation6], 0
      %s57 = sshll.u32 %s4, 4
      %s58 = int_to_ptr.hbm [resolvable:$true] %s57
      %s59 = sshll.u32 [#allocation7], 4
      %s60 = int_to_ptr.vmem [resolvable:$true] %s59
      %65 = dma.hbm_to_vmem [thread:$0]  %s58, 2048, %s60, [#allocation6], 64, 64, 4
    $region21: #{tpu_custom_call.1} parent=1 // pred_fallthru
      _
    // Predicated region
    $region22: #{tpu_custom_call.1} parent=1 // pred_check
      _
    $region23: #{tpu_custom_call.1} parent=1 // pred_check_branch
      %67 = sbr.rel (0) target = $region25
    $region24: #{tpu_custom_call.1} parent=1 // pred_region
      _
    $region25: #{tpu_custom_call.1} parent=1 // pred_fallthru
      _
    // Predicated region
    $region26: #{tpu_custom_call.1} parent=1 // pred_check
      _
    $region27: #{tpu_custom_call.1} parent=1 // pred_check_branch
      %69 = sbr.rel (0) target = $region29
    $region28: #{tpu_custom_call.1} parent=1 // pred_region
      _
    $region29: #{tpu_custom_call.1} parent=1 // pred_fallthru
      _
    // Predicated region
    $region30: #{tpu_custom_call.1} parent=1 // pred_check
      _
    $region31: #{tpu_custom_call.1} parent=1 // pred_check_branch
      %71 = sbr.rel (0) target = $region33
    $region32: #{tpu_custom_call.1} parent=1 // pred_region
      _
    $region33: #{tpu_custom_call.1} parent=1 // pred_fallthru
      _
    // Predicated region
    $region34: #{tpu_custom_call.1} parent=1 // pred_check
      _
    $region35: #{tpu_custom_call.1} parent=1 // pred_check_branch
      %73 = sbr.rel (0) target = $region37
    $region36: #{tpu_custom_call.1} parent=1 // pred_region
      %75 = vsyncadd [#allocation9], 0
      %s76 = sshll.u32 %s8, 4
      %s77 = int_to_ptr.hbm [resolvable:$true] %s76
      %s78 = sshll.u32 [#allocation8], 4
      %s79 = int_to_ptr.vmem [resolvable:$true] %s78
      %84 = dma.hbm_to_vmem [thread:$0]  %s77, 1024, %s79, [#allocation9], 64, 64, 4
    $region37: #{tpu_custom_call.1} parent=1 // pred_fallthru
      _
    // Predicated region
    $region38: #{tpu_custom_call.1} parent=1 // pred_check
      _
    $region39: #{tpu_custom_call.1} parent=1 // pred_check_branch
      %86 = sbr.rel (0) target = $region41
    $region40: #{tpu_custom_call.1} parent=1 // pred_region
      _
    $region41: #{tpu_custom_call.1} parent=1 // pred_fallthru
      _
    // Predicated region
    $region42: #{tpu_custom_call.1} parent=1 // pred_check
      _
    $region43: #{tpu_custom_call.1} parent=1 // pred_check_branch
      %88 = sbr.rel (0) target = $region45
    $region44: #{tpu_custom_call.1} parent=1 // pred_region
      _
    $region45: #{tpu_custom_call.1} parent=1 // pred_fallthru
      _
    // Predicated region
    $region46: #{tpu_custom_call.1} parent=1 // pred_check
      _
    $region47: #{tpu_custom_call.1} parent=1 // pred_check_branch
      %90 = sbr.rel (0) target = $region49
    $region48: #{tpu_custom_call.1} parent=1 // pred_region
      _
    $region49: #{tpu_custom_call.1} parent=1 // pred_fallthru
      _
    // Predicated region
    $region50: #{tpu_custom_call.1} parent=1 // pred_check
      _
    $region51: #{tpu_custom_call.1} parent=1 // pred_check_branch
      %92 = sbr.rel (0) target = $region53
    $region52: #{tpu_custom_call.1} parent=1 // pred_region
      %94 = vsyncadd [#allocation9], 0
      %s95 = sshll.u32 %s12, 4
      %s96 = int_to_ptr.hbm [resolvable:$true] %s95
      %s97 = sshll.u32 [#allocation10], 4
      %s98 = int_to_ptr.vmem [resolvable:$true] %s97
      %103 = dma.hbm_to_vmem [thread:$0]  %s96, 2048, %s98, [#allocation9], 64, 64, 4
    $region53: #{tpu_custom_call.1} parent=1 // pred_fallthru
      _
    // Predicated region
    $region54: #{tpu_custom_call.1} parent=1 // pred_check
      _
    $region55: #{tpu_custom_call.1} parent=1 // pred_check_branch
      %105 = sbr.rel (0) target = $region57
    $region56: #{tpu_custom_call.1} parent=1 // pred_region
      _
    $region57: #{tpu_custom_call.1} parent=1 // pred_fallthru
      _
    // Predicated region
    $region58: #{tpu_custom_call.1} parent=1 // pred_check
      _
    $region59: #{tpu_custom_call.1} parent=1 // pred_check_branch
      %107 = sbr.rel (0) target = $region61
    $region60: #{tpu_custom_call.1} parent=1 // pred_region
      %109 = dma.done [#allocation3], 512
    $region61: #{tpu_custom_call.1} parent=1 // pred_fallthru
      _
    // Predicated region
    $region62: #{tpu_custom_call.1} parent=1 // pred_check
      _
    $region63: #{tpu_custom_call.1} parent=1 // pred_check_branch
      %111 = sbr.rel (0) target = $region65
    $region64: #{tpu_custom_call.1} parent=1 // pred_region
      %113 = dma.done [#allocation6], 128
    $region65: #{tpu_custom_call.1} parent=1 // pred_fallthru
      _
    // Predicated region
    $region66: #{tpu_custom_call.1} parent=1 // pred_check
      _
    $region67: #{tpu_custom_call.1} parent=1 // pred_check_branch
      %115 = sbr.rel (0) target = $region69
    $region68: #{tpu_custom_call.1} parent=1 // pred_region
      %117 = dma.done [#allocation6], 2048
    $region69: #{tpu_custom_call.1} parent=1 // pred_fallthru
      _
    // Predicated region
    $region70: #{tpu_custom_call.1} parent=1 // pred_check
      _
    $region71: #{tpu_custom_call.1} parent=1 // pred_check_branch
      %119 = sbr.rel (0) target = $region73
    $region72: #{tpu_custom_call.1} parent=1 // pred_region
      %121 = dma.done [#allocation9], 1024
    $region73: #{tpu_custom_call.1} parent=1 // pred_fallthru
      _
    // Predicated region
    $region74: #{tpu_custom_call.1} parent=1 // pred_check
      _
    $region75: #{tpu_custom_call.1} parent=1 // pred_check_branch
      %123 = sbr.rel (0) target = $region77
    $region76: #{tpu_custom_call.1} parent=1 // pred_region
      %125 = dma.done [#allocation9], 2048
    $region77: #{tpu_custom_call.1} parent=1 // pred_fallthru
      _
    %v127 = vld [vmem:[#allocation2] sm:$0xff]
    %v128 = vld [vmem:[#allocation2 + $0x8] sm:$0xff]
    %v129 = vld [vmem:[#allocation2 + $0x10] sm:$0xff]
    %v130 = vld [vmem:[#allocation2 + $0x18] sm:$0xff]
    %v131 = vld [vmem:[%s2] sm:$0x1]
    %v132 = vld [vmem:[#allocation7] sm:$0xf]
    %v133 = vld [vmem:[#allocation7 + $0x4] sm:$0xf]
    %v134 = vld [vmem:[#allocation7 + $0x8] sm:$0xf]
    %v135 = vld [vmem:[#allocation7 + $0xc] sm:$0xf]
    %v136 = vld [vmem:[#allocation7 + $0x10] sm:$0xf]
    %v137 = vld [vmem:[#allocation7 + $0x14] sm:$0xf]
    %v138 = vld [vmem:[#allocation7 + $0x18] sm:$0xf]
    %v139 = vld [vmem:[#allocation7 + $0x1c] sm:$0xf]
    %v140 = vld [vmem:[#allocation7 + $0x20] sm:$0xf]
    %v141 = vld [vmem:[#allocation7 + $0x24] sm:$0xf]
    %v142 = vld [vmem:[#allocation7 + $0x28] sm:$0xf]
    %v143 = vld [vmem:[#allocation7 + $0x2c] sm:$0xf]
    %v144 = vld [vmem:[#allocation7 + $0x30] sm:$0xf]
    %v145 = vld [vmem:[#allocation7 + $0x34] sm:$0xf]
    %v146 = vld [vmem:[#allocation7 + $0x38] sm:$0xf]
    %v147 = vld [vmem:[#allocation7 + $0x3c] sm:$0xf]
    %v148 = vld [vmem:[#allocation7 + $0x40] sm:$0xf]
    %v149 = vld [vmem:[#allocation7 + $0x44] sm:$0xf]
    %v150 = vld [vmem:[#allocation7 + $0x48] sm:$0xf]
    %v151 = vld [vmem:[#allocation7 + $0x4c] sm:$0xf]
    %v152 = vld [vmem:[#allocation7 + $0x50] sm:$0xf]
    %v153 = vld [vmem:[#allocation7 + $0x54] sm:$0xf]
    %v154 = vld [vmem:[#allocation7 + $0x58] sm:$0xf]
    %v155 = vld [vmem:[#allocation7 + $0x5c] sm:$0xf]
    %v156 = vld [vmem:[#allocation7 + $0x60] sm:$0xf]
    %v157 = vld [vmem:[#allocation7 + $0x64] sm:$0xf]
    %v158 = vld [vmem:[#allocation7 + $0x68] sm:$0xf]
    %v159 = vld [vmem:[#allocation7 + $0x6c] sm:$0xf]
    %v160 = vld [vmem:[#allocation7 + $0x70] sm:$0xf]
    %v161 = vld [vmem:[#allocation7 + $0x74] sm:$0xf]
    %v162 = vld [vmem:[#allocation7 + $0x78] sm:$0xf]
    %v163 = vld [vmem:[#allocation7 + $0x7c] sm:$0xf]
    %v164 = vld [vmem:[%s5] sm:$0x1]
    %v165 = vld [vmem:[%s6] sm:$0x1]
    %v166 = vld [vmem:[%s7] sm:$0x1]
    %v168 = vperm.slane %v164, 0
    %v174 = vunpack.c.l.b16 %v127
    %v175 = vunpack.c.h.b16 %v127
    %v176 = vunpack.c.l.b16 %v128
    %v177 = vunpack.c.h.b16 %v128
    %v178 = vunpack.c.l.b16 %v129
    %v179 = vunpack.c.h.b16 %v129
    %v180 = vunpack.c.l.b16 %v130
    %v181 = vunpack.c.h.b16 %v130
    %v182 = vpack.c.b16 %v176, %v174
    %v183 = vpack.c.b16 %v177, %v175
    %v184 = vpack.c.b16 %v180, %v178
    %v185 = vpack.c.b16 %v181, %v179
    %v222 = vunpack.c.l.b16 %v132
    %v223 = vunpack.c.l.b16 %v133
    %v224 = vunpack.c.l.b16 %v134
    %v225 = vunpack.c.l.b16 %v135
    %v226 = vunpack.c.l.b16 %v136
    %v227 = vunpack.c.l.b16 %v137
    %v228 = vunpack.c.l.b16 %v138
    %v229 = vunpack.c.l.b16 %v139
    %v230 = vunpack.c.l.b16 %v140
    %v231 = vunpack.c.l.b16 %v141
    %v232 = vunpack.c.l.b16 %v142
    %v233 = vunpack.c.l.b16 %v143
    %v234 = vunpack.c.l.b16 %v144
    %v235 = vunpack.c.l.b16 %v145
    %v236 = vunpack.c.l.b16 %v146
    %v237 = vunpack.c.l.b16 %v147
    %v238 = vunpack.c.l.b16 %v148
    %v239 = vunpack.c.l.b16 %v149
    %v240 = vunpack.c.l.b16 %v150
    %v241 = vunpack.c.l.b16 %v151
    %v242 = vunpack.c.l.b16 %v152
    %v243 = vunpack.c.l.b16 %v153
    %v244 = vunpack.c.l.b16 %v154
    %v245 = vunpack.c.l.b16 %v155
    %v246 = vunpack.c.l.b16 %v156
    %v247 = vunpack.c.l.b16 %v157
    %v248 = vunpack.c.l.b16 %v158
    %v249 = vunpack.c.l.b16 %v159
    %v250 = vunpack.c.l.b16 %v160
    %v251 = vunpack.c.l.b16 %v161
    %v252 = vunpack.c.l.b16 %v162
    %v253 = vunpack.c.l.b16 %v163
    %v254 = vpack.c.b16 %v223, %v222
    %v255 = vpack.c.b16 %v225, %v224
    %v256 = vpack.c.b16 %v227, %v226
    %v257 = vpack.c.b16 %v229, %v228
    %v258 = vpack.c.b16 %v231, %v230
    %v259 = vpack.c.b16 %v233, %v232
    %v260 = vpack.c.b16 %v235, %v234
    %v261 = vpack.c.b16 %v237, %v236
    %v262 = vpack.c.b16 %v239, %v238
    %v263 = vpack.c.b16 %v241, %v240
    %v264 = vpack.c.b16 %v243, %v242
    %v265 = vpack.c.b16 %v245, %v244
    %v266 = vpack.c.b16 %v247, %v246
    %v267 = vpack.c.b16 %v249, %v248
    %v268 = vpack.c.b16 %v251, %v250
    %v269 = vpack.c.b16 %v253, %v252
    %286 = vmatpush.bf16.msra.mxu0 %v261
    %287 = vmatpush.bf16.msra.mxu0 %v260
    %288 = vmatpush.bf16.msra.mxu0 %v259
    %289 = vmatpush.bf16.msra.mxu0 %v258
    %290 = vmatpush.bf16.msra.mxu0 %v257
    %291 = vmatpush.bf16.msra.mxu0 %v256
    %292 = vmatpush.bf16.msra.mxu0 %v255
    %293 = vmatpush.bf16.msra.mxu0 %v254
    %294 = vmatmul.bf16.gmra.mxu0 %v182
    %v295 = vpop.f32.mrf.mxu0
    %v296 = vadd.f32 %v168, %v295
    %v297 = vpop.f32.mrf.mxu0
    %v298 = vadd.f32 %v168, %v297
    %299 = vmatmul.bf16.gmra.mxu0 %v184
    %v300 = vpop.f32.mrf.mxu0
    %v301 = vadd.f32 %v168, %v300
    %v302 = vpop.f32.mrf.mxu0
    %v303 = vadd.f32 %v168, %v302
    %304 = vdwg.mxu0
    %305 = vmatpush.bf16.msra.mxu0 %v269
    %306 = vmatpush.bf16.msra.mxu0 %v268
    %307 = vmatpush.bf16.msra.mxu0 %v267
    %308 = vmatpush.bf16.msra.mxu0 %v266
    %309 = vmatpush.bf16.msra.mxu0 %v265
    %310 = vmatpush.bf16.msra.mxu0 %v264
    %311 = vmatpush.bf16.msra.mxu0 %v263
    %312 = vmatpush.bf16.msra.mxu0 %v262
    %313 = vmatmul.bf16.gmra.mxu0 %v183
    %v314 = vpop.f32.mrf.mxu0
    %v315 = vadd.f32 %v296, %v314
    %v316 = vpop.f32.mrf.mxu0
    %v317 = vadd.f32 %v298, %v316
    %318 = vmatmul.bf16.gmra.mxu0 %v185
    %v319 = vpop.f32.mrf.mxu0
    %v320 = vadd.f32 %v301, %v319
    %v321 = vpop.f32.mrf.mxu0
    %v322 = vadd.f32 %v303, %v321
    %323 = vdwg.mxu0
    %324 = vadd.xlane.f32.xlu0 %v315
    %v325 = vpop.xlane.xlu0 %324
    %326 = vadd.xlane.f32.xlu0 %v317
    %v327 = vpop.xlane.xlu0 %326
    %328 = vadd.xlane.f32.xlu0 %v320
    %v329 = vpop.xlane.xlu0 %328
    %330 = vadd.xlane.f32.xlu0 %v322
    %v331 = vpop.xlane.xlu0 %330
    %v332 = vrcp.pop 128.0
    %v333 = vmul.f32 128.0, %v332
    %v334 = vsub.f32 1.0, %v333
    %v335 = vmul.f32 %v332, %v334
    %v336 = vadd.f32 %v332, %v335
    %vm337 = vweird.f32 %v332
    %v338 = vsel %vm337, %v332, %v336
    %v339 = vmul.f32 %v325, %v338
    %v340 = vmul.f32 %v327, %v338
    %v341 = vmul.f32 %v329, %v338
    %v342 = vmul.f32 %v331, %v338
    %v343 = vmul.f32 %v315, %v315
    %v344 = vmul.f32 %v317, %v317
    %v345 = vmul.f32 %v320, %v320
    %v346 = vmul.f32 %v322, %v322
    %347 = vadd.xlane.f32.xlu0 %v343
    %v348 = vpop.xlane.xlu0 %347
    %349 = vadd.xlane.f32.xlu0 %v344
    %v350 = vpop.xlane.xlu0 %349
    %351 = vadd.xlane.f32.xlu0 %v345
    %v352 = vpop.xlane.xlu0 %351
    %353 = vadd.xlane.f32.xlu0 %v346
    %v354 = vpop.xlane.xlu0 %353
    %v355 = vmul.f32 %v348, %v338
    %v356 = vmul.f32 %v350, %v338
    %v357 = vmul.f32 %v352, %v338
    %v358 = vmul.f32 %v354, %v338
    %v359 = vmul.f32 %v339, %v339
    %v360 = vmul.f32 %v340, %v340
    %v361 = vmul.f32 %v341, %v341
    %v362 = vmul.f32 %v342, %v342
    %v363 = vsub.f32 %v355, %v359
    %v364 = vsub.f32 %v356, %v360
    %v365 = vsub.f32 %v357, %v361
    %v366 = vsub.f32 %v358, %v362
    %v367 = vsub.f32 %v315, %v339
    %v368 = vsub.f32 %v317, %v340
    %v369 = vsub.f32 %v320, %v341
    %v370 = vsub.f32 %v322, %v342
    %v371 = vadd.f32 %v363, 1e-05
    %v372 = vadd.f32 %v364, 1e-05
    %v373 = vadd.f32 %v365, 1e-05
    %v374 = vadd.f32 %v366, 1e-05
    %v375 = vrsqrt.pop %v371
    %v376 = vmul.f32 %v375, %v371
    %v377 = vmul.f32 %v376, %v375
    %v378 = vmul.f32 0.5, %v377
    %v379 = vsub.f32 1.5, %v378
    %v380 = vmul.f32 %v375, %v379
    %vm381 = vweird.f32 %v371
    %vm382 = vweird.f32 %v375
    %vm383 = vmor %vm381, %vm382
    %v384 = vsel %vm383, %v375, %v380
    %v385 = vrsqrt.pop %v372
    %v386 = vmul.f32 %v385, %v372
    %v387 = vmul.f32 %v386, %v385
    %v388 = vmul.f32 0.5, %v387
    %v389 = vsub.f32 1.5, %v388
    %v390 = vmul.f32 %v385, %v389
    %vm391 = vweird.f32 %v372
    %vm392 = vweird.f32 %v385
    %vm393 = vmor %vm391, %vm392
    %v394 = vsel %vm393, %v385, %v390
    %v395 = vrsqrt.pop %v373
    %v396 = vmul.f32 %v395, %v373
    %v397 = vmul.f32 %v396, %v395
    %v398 = vmul.f32 0.5, %v397
    %v399 = vsub.f32 1.5, %v398
    %v400 = vmul.f32 %v395, %v399
    %vm401 = vweird.f32 %v373
    %vm402 = vweird.f32 %v395
    %vm403 = vmor %vm401, %vm402
    %v404 = vsel %vm403, %v395, %v400
    %v405 = vrsqrt.pop %v374
    %v406 = vmul.f32 %v405, %v374
    %v407 = vmul.f32 %v406, %v405
    %v408 = vmul.f32 0.5, %v407
    %v409 = vsub.f32 1.5, %v408
    %v410 = vmul.f32 %v405, %v409
    %vm411 = vweird.f32 %v374
    %vm412 = vweird.f32 %v405
    %vm413 = vmor %vm411, %vm412
    %v414 = vsel %vm413, %v405, %v410
    %v415 = vmul.f32 %v367, %v384
    %v416 = vmul.f32 %v368, %v394
    %v417 = vmul.f32 %v369, %v404
    %v418 = vmul.f32 %v370, %v414
    %v420 = vperm.slane %v165, 0
    %v422 = vmul.f32 %v415, %v420
    %v423 = vmul.f32 %v416, %v420
    %v424 = vmul.f32 %v417, %v420
    %v425 = vmul.f32 %v418, %v420
    %v427 = vperm.slane %v166, 0
    %v429 = vadd.f32 %v422, %v427
    %v430 = vadd.f32 %v423, %v427
    %v431 = vadd.f32 %v424, %v427
    %v432 = vadd.f32 %v425, %v427
    %v433 = vpack.c.bf16 %v430, %v429
    %v434 = vpack.c.bf16 %v432, %v431
    %vm435 = vcmask 261120
    %v437 = vsel %vm435, %v131, 0
    %439 = vmatpush.bf16.msra.mxu0 0
    %440 = vmatpush.bf16.msra.mxu0 0
    %441 = vmatpush.bf16.msra.mxu0 0
    %442 = vmatpush.bf16.msra.mxu0 0
    %443 = vmatpush.bf16.msra.mxu0 0
    %444 = vmatpush.bf16.msra.mxu0 0
    %445 = vmatpush.bf16.msra.mxu0 %v434
    %446 = vmatpush.bf16.msra.mxu0 %v433
    %447 = vmatmul.bf16.gmra.mxu0 %v437
    %v448 = vpop.f32.mrf.mxu0
    %v449 = vadd.f32 0.0, %v448
    %v450 = vpop.f32.mrf.mxu0
    %451 = vdwg.mxu0
    %v452 = vld [vmem:[#allocation5] sm:$0xf]
    %v453 = vld [vmem:[#allocation5 + $0x4] sm:$0xf]
    %v454 = vld [vmem:[%s3] sm:$0x1]
    %v455 = vld [vmem:[#allocation8] sm:$0xf]
    %v456 = vld [vmem:[#allocation8 + $0x4] sm:$0xf]
    %v457 = vld [vmem:[#allocation8 + $0x8] sm:$0xf]
    %v458 = vld [vmem:[#allocation8 + $0xc] sm:$0xf]
    %v459 = vld [vmem:[#allocation8 + $0x10] sm:$0xf]
    %v460 = vld [vmem:[#allocation8 + $0x14] sm:$0xf]
    %v461 = vld [vmem:[#allocation8 + $0x18] sm:$0xf]
    %v462 = vld [vmem:[#allocation8 + $0x1c] sm:$0xf]
    %v463 = vld [vmem:[#allocation8 + $0x20] sm:$0xf]
    %v464 = vld [vmem:[#allocation8 + $0x24] sm:$0xf]
    %v465 = vld [vmem:[#allocation8 + $0x28] sm:$0xf]
    %v466 = vld [vmem:[#allocation8 + $0x2c] sm:$0xf]
    %v467 = vld [vmem:[#allocation8 + $0x30] sm:$0xf]
    %v468 = vld [vmem:[#allocation8 + $0x34] sm:$0xf]
    %v469 = vld [vmem:[#allocation8 + $0x38] sm:$0xf]
    %v470 = vld [vmem:[#allocation8 + $0x3c] sm:$0xf]
    %v471 = vld [vmem:[%s9] sm:$0x1]
    %v472 = vld [vmem:[%s10] sm:$0x1]
    %v473 = vld [vmem:[%s11] sm:$0x1]
    %v475 = vperm.slane %v471, 0
    %v479 = vunpack.c.l.b16 %v452
    %v480 = vunpack.c.l.b16 %v453
    %v481 = vpack.c.b16 %v480, %v479
    %v499 = vunpack.c.l.b16 %v455
    %v500 = vunpack.c.l.b16 %v456
    %v501 = vunpack.c.l.b16 %v457
    %v502 = vunpack.c.l.b16 %v458
    %v503 = vunpack.c.l.b16 %v459
    %v504 = vunpack.c.l.b16 %v460
    %v505 = vunpack.c.l.b16 %v461
    %v506 = vunpack.c.l.b16 %v462
    %v507 = vunpack.c.l.b16 %v463
    %v508 = vunpack.c.l.b16 %v464
    %v509 = vunpack.c.l.b16 %v465
    %v510 = vunpack.c.l.b16 %v466
    %v511 = vunpack.c.l.b16 %v467
    %v512 = vunpack.c.l.b16 %v468
    %v513 = vunpack.c.l.b16 %v469
    %v514 = vunpack.c.l.b16 %v470
    %v515 = vpack.c.b16 %v500, %v499
    %v516 = vpack.c.b16 %v502, %v501
    %v517 = vpack.c.b16 %v504, %v503
    %v518 = vpack.c.b16 %v506, %v505
    %v519 = vpack.c.b16 %v508, %v507
    %v520 = vpack.c.b16 %v510, %v509
    %v521 = vpack.c.b16 %v512, %v511
    %v522 = vpack.c.b16 %v514, %v513
    %531 = vmatpush.bf16.msra.mxu0 %v522
    %532 = vmatpush.bf16.msra.mxu0 %v521
    %533 = vmatpush.bf16.msra.mxu0 %v520
    %534 = vmatpush.bf16.msra.mxu0 %v519
    %535 = vmatpush.bf16.msra.mxu0 %v518
    %536 = vmatpush.bf16.msra.mxu0 %v517
    %537 = vmatpush.bf16.msra.mxu0 %v516
    %538 = vmatpush.bf16.msra.mxu0 %v515
    %539 = vmatmul.bf16.gmra.mxu0 %v481
    %v540 = vpop.f32.mrf.mxu0
    %v541 = vadd.f32 %v475, %v540
    %v542 = vpop.f32.mrf.mxu0
    %v543 = vadd.f32 %v475, %v542
    %544 = vdwg.mxu0
    %545 = vadd.xlane.f32.xlu0 %v541
    %v546 = vpop.xlane.xlu0 %545
    %547 = vadd.xlane.f32.xlu0 %v543
    %v548 = vpop.xlane.xlu0 %547
    %v549 = vmul.f32 %v546, %v338
    %v550 = vmul.f32 %v548, %v338
    %v551 = vmul.f32 %v541, %v541
    %v552 = vmul.f32 %v543, %v543
    %553 = vadd.xlane.f32.xlu0 %v551
    %v554 = vpop.xlane.xlu0 %553
    %555 = vadd.xlane.f32.xlu0 %v552
    %v556 = vpop.xlane.xlu0 %555
    %v557 = vmul.f32 %v554, %v338
    %v558 = vmul.f32 %v556, %v338
    %v559 = vmul.f32 %v549, %v549
    %v560 = vmul.f32 %v550, %v550
    %v561 = vsub.f32 %v557, %v559
    %v562 = vsub.f32 %v558, %v560
    %v563 = vsub.f32 %v541, %v549
    %v564 = vsub.f32 %v543, %v550
    %v565 = vadd.f32 %v561, 1e-05
    %v566 = vadd.f32 %v562, 1e-05
    %v567 = vrsqrt.pop %v565
    %v568 = vmul.f32 %v567, %v565
    %v569 = vmul.f32 %v568, %v567
    %v570 = vmul.f32 0.5, %v569
    %v571 = vsub.f32 1.5, %v570
    %v572 = vmul.f32 %v567, %v571
    %vm573 = vweird.f32 %v565
    %vm574 = vweird.f32 %v567
    %vm575 = vmor %vm573, %vm574
    %v576 = vsel %vm575, %v567, %v572
    %v577 = vrsqrt.pop %v566
    %v578 = vmul.f32 %v577, %v566
    %v579 = vmul.f32 %v578, %v577
    %v580 = vmul.f32 0.5, %v579
    %v581 = vsub.f32 1.5, %v580
    %v582 = vmul.f32 %v577, %v581
    %vm583 = vweird.f32 %v566
    %vm584 = vweird.f32 %v577
    %vm585 = vmor %vm583, %vm584
    %v586 = vsel %vm585, %v577, %v582
    %v587 = vmul.f32 %v563, %v576
    %v588 = vmul.f32 %v564, %v586
    %v590 = vperm.slane %v472, 0
    %v592 = vmul.f32 %v587, %v590
    %v593 = vmul.f32 %v588, %v590
    %v595 = vperm.slane %v473, 0
    %v597 = vadd.f32 %v592, %v595
    %v598 = vadd.f32 %v593, %v595
    %v599 = vpack.c.bf16 %v598, %v597
    %vm600 = vcmask 130048
    %v602 = vsel %vm600, %v454, 0
    %604 = vmatpush.bf16.msra.mxu0 0
    %605 = vmatpush.bf16.msra.mxu0 0
    %606 = vmatpush.bf16.msra.mxu0 0
    %607 = vmatpush.bf16.msra.mxu0 0
    %608 = vmatpush.bf16.msra.mxu0 0
    %609 = vmatpush.bf16.msra.mxu0 0
    %610 = vmatpush.bf16.msra.mxu0 0
    %611 = vmatpush.bf16.msra.mxu0 %v599
    %612 = vmatmul.bf16.gmra.mxu0 %v602
    %v613 = vpop.f32.mrf.mxu0
    %v614 = vadd.f32 0.0, %v613
    %v615 = vpop.f32.mrf.mxu0
    %616 = vdwg.mxu0
    %v617 = vpack.c.bf16 %v449, %v449
    %v618 = vpack.c.bf16 %v614, %v614
    %v619 = vld [vmem:[#allocation10] sm:$0xf]
    %v620 = vld [vmem:[#allocation10 + $0x4] sm:$0xf]
    %v621 = vld [vmem:[#allocation10 + $0x8] sm:$0xf]
    %v622 = vld [vmem:[#allocation10 + $0xc] sm:$0xf]
    %v623 = vld [vmem:[#allocation10 + $0x10] sm:$0xf]
    %v624 = vld [vmem:[#allocation10 + $0x14] sm:$0xf]
    %v625 = vld [vmem:[#allocation10 + $0x18] sm:$0xf]
    %v626 = vld [vmem:[#allocation10 + $0x1c] sm:$0xf]
    %v627 = vld [vmem:[#allocation10 + $0x20] sm:$0xf]
    %v628 = vld [vmem:[#allocation10 + $0x24] sm:$0xf]
    %v629 = vld [vmem:[#allocation10 + $0x28] sm:$0xf]
    %v630 = vld [vmem:[#allocation10 + $0x2c] sm:$0xf]
    %v631 = vld [vmem:[#allocation10 + $0x30] sm:$0xf]
    %v632 = vld [vmem:[#allocation10 + $0x34] sm:$0xf]
    %v633 = vld [vmem:[#allocation10 + $0x38] sm:$0xf]
    %v634 = vld [vmem:[#allocation10 + $0x3c] sm:$0xf]
    %v635 = vld [vmem:[#allocation10 + $0x40] sm:$0xf]
    %v636 = vld [vmem:[#allocation10 + $0x44] sm:$0xf]
    %v637 = vld [vmem:[#allocation10 + $0x48] sm:$0xf]
    %v638 = vld [vmem:[#allocation10 + $0x4c] sm:$0xf]
    %v639 = vld [vmem:[#allocation10 + $0x50] sm:$0xf]
    %v640 = vld [vmem:[#allocation10 + $0x54] sm:$0xf]
    %v641 = vld [vmem:[#allocation10 + $0x58] sm:$0xf]
    %v642 = vld [vmem:[#allocation10 + $0x5c] sm:$0xf]
    %v643 = vld [vmem:[#allocation10 + $0x60] sm:$0xf]
    %v644 = vld [vmem:[#allocation10 + $0x64] sm:$0xf]
    %v645 = vld [vmem:[#allocation10 + $0x68] sm:$0xf]
    %v646 = vld [vmem:[#allocation10 + $0x6c] sm:$0xf]
    %v647 = vld [vmem:[#allocation10 + $0x70] sm:$0xf]
    %v648 = vld [vmem:[#allocation10 + $0x74] sm:$0xf]
    %v649 = vld [vmem:[#allocation10 + $0x78] sm:$0xf]
    %v650 = vld [vmem:[#allocation10 + $0x7c] sm:$0xf]
    %v651 = vld [vmem:[%s13] sm:$0x1]
    %v653 = vperm.slane %v651, 0
    %v687 = vunpack.c.l.b16 %v619
    %v688 = vunpack.c.l.b16 %v620
    %v689 = vunpack.c.l.b16 %v621
    %v690 = vunpack.c.l.b16 %v622
    %v691 = vunpack.c.l.b16 %v623
    %v692 = vunpack.c.l.b16 %v624
    %v693 = vunpack.c.l.b16 %v625
    %v694 = vunpack.c.l.b16 %v626
    %v695 = vunpack.c.l.b16 %v627
    %v696 = vunpack.c.l.b16 %v628
    %v697 = vunpack.c.l.b16 %v629
    %v698 = vunpack.c.l.b16 %v630
    %v699 = vunpack.c.l.b16 %v631
    %v700 = vunpack.c.l.b16 %v632
    %v701 = vunpack.c.l.b16 %v633
    %v702 = vunpack.c.l.b16 %v634
    %v703 = vunpack.c.l.b16 %v635
    %v704 = vunpack.c.l.b16 %v636
    %v705 = vunpack.c.l.b16 %v637
    %v706 = vunpack.c.l.b16 %v638
    %v707 = vunpack.c.l.b16 %v639
    %v708 = vunpack.c.l.b16 %v640
    %v709 = vunpack.c.l.b16 %v641
    %v710 = vunpack.c.l.b16 %v642
    %v711 = vunpack.c.l.b16 %v643
    %v712 = vunpack.c.l.b16 %v644
    %v713 = vunpack.c.l.b16 %v645
    %v714 = vunpack.c.l.b16 %v646
    %v715 = vunpack.c.l.b16 %v647
    %v716 = vunpack.c.l.b16 %v648
    %v717 = vunpack.c.l.b16 %v649
    %v718 = vunpack.c.l.b16 %v650
    %v719 = vpack.c.b16 %v688, %v687
    %v720 = vpack.c.b16 %v690, %v689
    %v721 = vpack.c.b16 %v692, %v691
    %v722 = vpack.c.b16 %v694, %v693
    %v723 = vpack.c.b16 %v696, %v695
    %v724 = vpack.c.b16 %v698, %v697
    %v725 = vpack.c.b16 %v700, %v699
    %v726 = vpack.c.b16 %v702, %v701
    %v727 = vpack.c.b16 %v704, %v703
    %v728 = vpack.c.b16 %v706, %v705
    %v729 = vpack.c.b16 %v708, %v707
    %v730 = vpack.c.b16 %v710, %v709
    %v731 = vpack.c.b16 %v712, %v711
    %v732 = vpack.c.b16 %v714, %v713
    %v733 = vpack.c.b16 %v716, %v715
    %v734 = vpack.c.b16 %v718, %v717
    %751 = vmatpush.bf16.msra.mxu0 %v726
    %752 = vmatpush.bf16.msra.mxu0 %v725
    %753 = vmatpush.bf16.msra.mxu0 %v724
    %754 = vmatpush.bf16.msra.mxu0 %v723
    %755 = vmatpush.bf16.msra.mxu0 %v722
    %756 = vmatpush.bf16.msra.mxu0 %v721
    %757 = vmatpush.bf16.msra.mxu0 %v720
    %758 = vmatpush.bf16.msra.mxu0 %v719
    %759 = vmatmul.bf16.gmra.mxu0 %v617
    %v760 = vpop.f32.mrf.mxu0
    %v761 = vadd.f32 %v653, %v760
    %v762 = vpop.f32.mrf.mxu0
    %763 = vdwg.mxu0
    %764 = vmatpush.bf16.msra.mxu0 %v734
    %765 = vmatpush.bf16.msra.mxu0 %v733
    %766 = vmatpush.bf16.msra.mxu0 %v732
    %767 = vmatpush.bf16.msra.mxu0 %v731
    %768 = vmatpush.bf16.msra.mxu0 %v730
    %769 = vmatpush.bf16.msra.mxu0 %v729
    %770 = vmatpush.bf16.msra.mxu0 %v728
    %771 = vmatpush.bf16.msra.mxu0 %v727
    %772 = vmatmul.bf16.gmra.mxu0 %v618
    %v773 = vpop.f32.mrf.mxu0
    %v774 = vadd.f32 %v761, %v773
    %v775 = vpop.f32.mrf.mxu0
    %776 = vdwg.mxu0
    %777 = vst [vmem:[#allocation11] sm:$0x3] %v774
    // Predicated region
    $region78: #{tpu_custom_call.1} parent=1 // pred_check
      _
    $region79: #{tpu_custom_call.1} parent=1 // pred_check_branch
      %779 = sbr.rel (0) target = $region81
    $region80: #{tpu_custom_call.1} parent=1 // pred_region
      %781 = vsyncadd [#allocation4], 0
      %s783 = sshll.u32 [#allocation11], 4
      %s784 = int_to_ptr.vmem [resolvable:$true] %s783
      %s785 = sshll.u32 %s14, 4
      %s786 = int_to_ptr.hbm [resolvable:$true] %s785
      %788 = dma.vmem_to_hbm [thread:$0]  %s784, 32, %s786, [#allocation4]
    $region81: #{tpu_custom_call.1} parent=1 // pred_fallthru
      _
    // Predicated region
    $region82: #{tpu_custom_call.1} parent=1 // pred_check
      _
    $region83: #{tpu_custom_call.1} parent=1 // pred_check_branch
      %790 = sbr.rel (0) target = $region85
    $region84: #{tpu_custom_call.1} parent=1 // pred_region
      %792 = dma.done [#allocation4], 32
    $region85: #{tpu_custom_call.1} parent=1 // pred_fallthru
      _
    %793 = vsyncpa [#allocation3], 1
    %794 = vsyncpa [#allocation6], 1
    %795 = vsyncpa [#allocation9], 1
    %796 = vsyncpa [#allocation4], 1

</llo_original>
